<compile_context>
chip_gen: v7x
topology: tpu7x:2x2x1
jax: 0.10.0
libtpu: 0.0.40
codegen_flags: <defaults>
</compile_context>

<pallas_src>
import functools

import jax
import jax.numpy as jnp
from jax.experimental import pallas as pl
from jax.experimental.pallas import tpu as pltpu


def _round_up(x, m):
    return ((x + m - 1) // m) * m


def _critic_kernel(s_ref, a_ref, w1s_ref, w1a_ref, b1_ref,
                   w2_ref, b2_ref, w3_ref, b3_ref, o_ref, *, mxu_dtype):
    s = s_ref[...].astype(mxu_dtype)
    a = a_ref[...].astype(mxu_dtype)
    # fc1: fused concat via split weights (state part + action part).
    h1 = jnp.dot(s, w1s_ref[...].astype(mxu_dtype),
                 preferred_element_type=jnp.float32)
    h1 = h1 + jnp.dot(a, w1a_ref[...].astype(mxu_dtype),
                      preferred_element_type=jnp.float32)
    h1 = jnp.maximum(h1 + b1_ref[...], 0.0)          # f32 VPU math
    # fc2 + ReLU
    h2 = jnp.dot(h1.astype(mxu_dtype), w2_ref[...].astype(mxu_dtype),
                 preferred_element_type=jnp.float32)
    h2 = jnp.maximum(h2 + b2_ref[...], 0.0)
    # out: (H -> 1) as VPU multiply + XLU lane reduction (a 1-column MXU
    # matmul would light up 1/256 of the MXU); w3 stored as a (1, H) row.
    q = jnp.sum(h2 * w3_ref[...], axis=-1, keepdims=True) + b3_ref[...]
    o_ref[...] = q.astype(o_ref.dtype)


def _vmem_bytes(block_b, in_dim, hidden):
    """Rough f32 VMEM footprint estimate for a given batch tile."""
    acts = block_b * (2 * in_dim      # double-buffered state+action tiles
                      + 2 * hidden    # h1 / h2 intermediates
                      + 2 * 1)        # double-buffered (block_b, 1) output
    wts = 2 * (in_dim * hidden + hidden * hidden + 3 * hidden + 1)  # residents
    return 4 * (acts + wts)


_BLOCK_B_CAP = 4096          # fewer, larger grid steps (~0.35 us/step overhead)
_VMEM_BUDGET = 16 << 20      # conservative: fits even v5e's default scoped VMEM


def _pick_block_b(batch, in_dim, hidden):
    # v7x megacore: target >= 2 grid steps so both TensorCores get a whole
    # tile, while keeping tiles as large as the VMEM budget allows.
    target = min(_BLOCK_B_CAP,
                 _round_up(max(1, -(-batch // 2)), 8),
                 _round_up(batch, 8))
    bb = max(8, target)
    while bb > 8 and _vmem_bytes(bb, in_dim, hidden) > _VMEM_BUDGET:
        bb = max(8, _round_up(bb // 2, 8))
    return bb


def critic_forward(state, action, params, *, block_b=None,
                   mxu_dtype=jnp.float32):
    """Pallas implementation of CriticNetwork.forward: Q(s, a) -> [B, 1]."""
    w1s, w1a, b1, w2, b2, w3r, b3 = params
    B, Sd = state.shape
    Ad = action.shape[-1]
    H = w2.shape[0]

    if block_b is None:
        block_b = _pick_block_b(B, Sd + Ad, H)
    else:
        # Guard user-supplied tiles against the f32 (8, 128) sublane rule.
        block_b = max(8, _round_up(int(block_b), 8))

    # No host-side padding: boundary blocks use clamped DMAs (garbage rows in,
    # out-of-bounds output rows dropped on writeback).
    grid = (pl.cdiv(B, block_b),)

    def batch_spec(feat):
        return pl.BlockSpec((block_b, feat), lambda i: (i, 0))

    def resident_spec(arr):
        # Constant index_map => block stays VMEM-resident across grid steps.
        return pl.BlockSpec(arr.shape, lambda i: (0, 0))

    flops = 2 * B * (Sd * H + Ad * H + H * H + H)
    bytes_accessed = 4 * (B * (Sd + Ad + 1)
                          + (Sd + Ad) * H + H * H + 3 * H + 1)

    est = _vmem_bytes(block_b, Sd + Ad, H)
    # Explicit scoped-VMEM budget: defaults are 16 MiB (v5e) / 32 MiB (v6e,
    # v7x); stay well under v7x's 64 MiB physical.
    vmem_limit = int(min(max(2 * est + (1 << 20), 16 << 20), 40 << 20))

    kernel = functools.partial(_critic_kernel, mxu_dtype=mxu_dtype)

    return pl.pallas_call(
        kernel,
        out_shape=jax.ShapeDtypeStruct((B, 1), jnp.float32),
        grid=grid,
        in_specs=[
            batch_spec(Sd),                 # state tile
            batch_spec(Ad),                 # action tile
            resident_spec(w1s),
            resident_spec(w1a),
            resident_spec(b1),
            resident_spec(w2),
            resident_spec(b2),
            resident_spec(w3r),
            resident_spec(b3),
        ],
        out_specs=pl.BlockSpec((block_b, 1), lambda i: (i, 0)),
        compiler_params=pltpu.CompilerParams(
            # Independent batch tiles -> megacore sharding on v7x, harmless
            # no-op on single-TC v5e/v6e.
            dimension_semantics=("parallel",),
            vmem_limit_bytes=vmem_limit,
        ),
        cost_estimate=pl.CostEstimate(
            flops=flops, transcendentals=0, bytes_accessed=bytes_accessed),
    )(state, action, w1s, w1a, b1, w2, b2, w3r, b3)


def init_params(key, state_dim, action_dim, hidden_dim):
    """Deterministic synthetic params (PyTorch-style uniform fan-in init),
    already in the kernel-friendly layout (split W1, row-vector W3)."""
    in_dim = state_dim + action_dim
    ks = jax.random.split(key, 6)

    def lin(kw, kb, fan_in, fan_out):
        bound = 1.0 / jnp.sqrt(fan_in)
        w = jax.random.uniform(kw, (fan_in, fan_out), jnp.float32, -bound, bound)
        b = jax.random.uniform(kb, (1, fan_out), jnp.float32, -bound, bound)
        return w, b

    w1, b1 = lin(ks[0], ks[1], in_dim, hidden_dim)
    w2, b2 = lin(ks[2], ks[3], hidden_dim, hidden_dim)
    w3, b3 = lin(ks[4], ks[5], hidden_dim, 1)
    w1s, w1a = w1[:state_dim], w1[state_dim:]      # fuse concat into fc1
    w3r = w3.reshape(1, hidden_dim)                # row layout for VPU reduce
    b3 = b3.reshape(1, 1)
    return (w1s, w1a, b1, w2, b2, w3r, b3)


def critic_ref(state, action, params, *, mxu_dtype=jnp.float32):
    """Pure-JAX reference for correctness check."""
    w1s, w1a, b1, w2, b2, w3r, b3 = params
    h1 = (jnp.dot(state.astype(mxu_dtype), w1s.astype(mxu_dtype),
                  preferred_element_type=jnp.float32)
          + jnp.dot(action.astype(mxu_dtype), w1a.astype(mxu_dtype),
                    preferred_element_type=jnp.float32))
    h1 = jnp.maximum(h1 + b1, 0.0)
    h2 = jnp.dot(h1.astype(mxu_dtype), w2.astype(mxu_dtype),
                 preferred_element_type=jnp.float32)
    h2 = jnp.maximum(h2 + b2, 0.0)
    return jnp.sum(h2 * w3r, axis=-1, keepdims=True) + b3


if __name__ == "__main__":
    key = jax.random.PRNGKey(0)
    k_p, k_s, k_a, k_s2, k_a2 = jax.random.split(key, 5)

    batch, state_dim, action_dim, hidden_dim = 8, 12, 4, 32
    params = init_params(k_p, state_dim, action_dim, hidden_dim)

    # --- single-tile case (grid = (1,)) ---
    state = jax.random.normal(k_s, (batch, state_dim), jnp.float32)
    action = jax.random.normal(k_a, (batch, action_dim), jnp.float32)
    out = jax.block_until_ready(critic_forward(state, action, params))
    ref = critic_ref(state, action, params)
    assert out.shape == (batch, 1), out.shape
    assert jnp.allclose(out, ref, atol=1e-5, rtol=1e-5), (
        f"mismatch: max abs err {jnp.max(jnp.abs(out - ref))}")

    # --- non-divisible batch, multi-tile, NO host padding ---
    # B=20, block_b=8 -> grid=(3,); last tile rows 20..23 are clamped-DMA
    # garbage in and dropped on writeback.
    b2_ = 20
    state2 = jax.random.normal(k_s2, (b2_, state_dim), jnp.float32)
    action2 = jax.random.normal(k_a2, (b2_, action_dim), jnp.float32)
    out2 = jax.block_until_ready(
        critic_forward(state2, action2, params, block_b=8))
    ref2 = critic_ref(state2, action2, params)
    assert out2.shape == (b2_, 1), out2.shape
    assert jnp.allclose(out2, ref2, atol=1e-5, rtol=1e-5), (
        f"mismatch (tiled): max abs err {jnp.max(jnp.abs(out2 - ref2))}")

    # --- auto block_b on the non-divisible batch (v7x-aware picker: 2 steps) ---
    out3 = jax.block_until_ready(critic_forward(state2, action2, params))
    assert out3.shape == (b2_, 1), out3.shape
    assert jnp.allclose(out3, ref2, atol=1e-5, rtol=1e-5), (
        f"mismatch (auto tile): max abs err {jnp.max(jnp.abs(out3 - ref2))}")

    # --- optional bf16-MXU path (v5e/v6e bandwidth/throughput lever) ---
    out4 = jax.block_until_ready(
        critic_forward(state, action, params, mxu_dtype=jnp.bfloat16))
    ref4 = critic_ref(state, action, params, mxu_dtype=jnp.bfloat16)
    assert jnp.allclose(out4, ref4, atol=1e-2, rtol=1e-2), (
        f"mismatch (bf16): max abs err {jnp.max(jnp.abs(out4 - ref4))}")

    print("KERNEL_OK")
</pallas_src>

<mosaic_0001>
module attributes {stable_mosaic.version = 11 : i64} {
  func.func @_critic_kernel(%arg0: i32, %arg1: memref<8x12xf32, #tpu.memory_space<vmem>>, %arg2: memref<8x4xf32, #tpu.memory_space<vmem>>, %arg3: memref<12x32xf32, #tpu.memory_space<vmem>>, %arg4: memref<4x32xf32, #tpu.memory_space<vmem>>, %arg5: memref<1x32xf32, #tpu.memory_space<vmem>>, %arg6: memref<32x32xf32, #tpu.memory_space<vmem>>, %arg7: memref<1x32xf32, #tpu.memory_space<vmem>>, %arg8: memref<1x32xf32, #tpu.memory_space<vmem>>, %arg9: memref<1x1xf32, #tpu.memory_space<vmem>>, %arg10: memref<8x1xf32, #tpu.memory_space<vmem>>) attributes {dimension_semantics = [#tpu.dimension_semantics<parallel>], iteration_bounds = array<i64: 1>, scalar_prefetch = 0 : i64, scratch_operands = 0 : i64, tpu.core_type = #tpu.core_type<tc>, window_params = [{transform_indices = @transform_0, window_bounds = array<i64: 8, 12>}, {transform_indices = @transform_1, window_bounds = array<i64: 8, 4>}, {pipeline_mode = #tpu.pipeline_mode<synchronous>, transform_indices = @transform_2, window_bounds = array<i64: 12, 32>}, {pipeline_mode = #tpu.pipeline_mode<synchronous>, transform_indices = @transform_3, window_bounds = array<i64: 4, 32>}, {pipeline_mode = #tpu.pipeline_mode<synchronous>, transform_indices = @transform_4, window_bounds = array<i64: 1, 32>}, {pipeline_mode = #tpu.pipeline_mode<synchronous>, transform_indices = @transform_5, window_bounds = array<i64: 32, 32>}, {pipeline_mode = #tpu.pipeline_mode<synchronous>, transform_indices = @transform_6, window_bounds = array<i64: 1, 32>}, {pipeline_mode = #tpu.pipeline_mode<synchronous>, transform_indices = @transform_7, window_bounds = array<i64: 1, 32>}, {pipeline_mode = #tpu.pipeline_mode<synchronous>, transform_indices = @transform_8, window_bounds = array<i64: 1, 1>}, {transform_indices = @transform_9, window_bounds = array<i64: 8, 1>}]} {
    %c0 = arith.constant 0 : index
    %c0_0 = arith.constant 0 : index
    %0 = vector.load %arg1[%c0, %c0_0] : memref<8x12xf32, #tpu.memory_space<vmem>>, vector<8x12xf32>
    %c0_1 = arith.constant 0 : index
    %c0_2 = arith.constant 0 : index
    %1 = vector.load %arg2[%c0_1, %c0_2] : memref<8x4xf32, #tpu.memory_space<vmem>>, vector<8x4xf32>
    %c0_3 = arith.constant 0 : index
    %c0_4 = arith.constant 0 : index
    %2 = vector.load %arg3[%c0_3, %c0_4] : memref<12x32xf32, #tpu.memory_space<vmem>>, vector<12x32xf32>
    %cst = arith.constant dense<0.000000e+00> : vector<8x32xf32>
    %3 = tpu.matmul %0, %2, %cst {dimension_numbers = #tpu.dot_dimension_numbers<[1], [0], [0], [1], [0, 0, 1, 1], [], []>} : vector<8x12xf32>, vector<12x32xf32>, vector<8x32xf32> -> vector<8x32xf32>
    %c0_5 = arith.constant 0 : index
    %c0_6 = arith.constant 0 : index
    %4 = vector.load %arg4[%c0_5, %c0_6] : memref<4x32xf32, #tpu.memory_space<vmem>>, vector<4x32xf32>
    %cst_7 = arith.constant dense<0.000000e+00> : vector<8x32xf32>
    %5 = tpu.matmul %1, %4, %cst_7 {dimension_numbers = #tpu.dot_dimension_numbers<[1], [0], [0], [1], [0, 0, 1, 1], [], []>} : vector<8x4xf32>, vector<4x32xf32>, vector<8x32xf32> -> vector<8x32xf32>
    %6 = arith.addf %3, %5 : vector<8x32xf32>
    %c0_8 = arith.constant 0 : index
    %c0_9 = arith.constant 0 : index
    %7 = vector.load %arg5[%c0_8, %c0_9] : memref<1x32xf32, #tpu.memory_space<vmem>>, vector<1x32xf32>
    %8 = vector.broadcast %7 : vector<1x32xf32> to vector<8x32xf32>
    %9 = arith.addf %6, %8 : vector<8x32xf32>
    %cst_10 = arith.constant 0.000000e+00 : f32
    %10 = vector.broadcast %cst_10 : f32 to vector<8x32xf32>
    %11 = arith.maximumf %9, %10 : vector<8x32xf32>
    %c0_11 = arith.constant 0 : index
    %c0_12 = arith.constant 0 : index
    %12 = vector.load %arg6[%c0_11, %c0_12] : memref<32x32xf32, #tpu.memory_space<vmem>>, vector<32x32xf32>
    %cst_13 = arith.constant dense<0.000000e+00> : vector<8x32xf32>
    %13 = tpu.matmul %11, %12, %cst_13 {dimension_numbers = #tpu.dot_dimension_numbers<[1], [0], [0], [1], [0, 0, 1, 1], [], []>} : vector<8x32xf32>, vector<32x32xf32>, vector<8x32xf32> -> vector<8x32xf32>
    %c0_14 = arith.constant 0 : index
    %c0_15 = arith.constant 0 : index
    %14 = vector.load %arg7[%c0_14, %c0_15] : memref<1x32xf32, #tpu.memory_space<vmem>>, vector<1x32xf32>
    %15 = vector.broadcast %14 : vector<1x32xf32> to vector<8x32xf32>
    %16 = arith.addf %13, %15 : vector<8x32xf32>
    %cst_16 = arith.constant 0.000000e+00 : f32
    %17 = vector.broadcast %cst_16 : f32 to vector<8x32xf32>
    %18 = arith.maximumf %16, %17 : vector<8x32xf32>
    %c0_17 = arith.constant 0 : index
    %c0_18 = arith.constant 0 : index
    %19 = vector.load %arg8[%c0_17, %c0_18] : memref<1x32xf32, #tpu.memory_space<vmem>>, vector<1x32xf32>
    %20 = vector.broadcast %19 : vector<1x32xf32> to vector<8x32xf32>
    %21 = arith.mulf %18, %20 : vector<8x32xf32>
    %cst_19 = arith.constant dense<0.000000e+00> : vector<8xf32>
    %22 = vector.multi_reduction <add>, %21, %cst_19 [1] : vector<8x32xf32> to vector<8xf32>
    %23 = vector.shape_cast %22 : vector<8xf32> to vector<8x1xf32>
    %c0_20 = arith.constant 0 : index
    %c0_21 = arith.constant 0 : index
    %24 = vector.load %arg9[%c0_20, %c0_21] : memref<1x1xf32, #tpu.memory_space<vmem>>, vector<1x1xf32>
    %25 = vector.broadcast %24 : vector<1x1xf32> to vector<8x1xf32>
    %26 = arith.addf %23, %25 : vector<8x1xf32>
    %c0_22 = arith.constant 0 : index
    %c0_23 = arith.constant 0 : index
    %27 = vector.load %arg10[%c0_22, %c0_23] : memref<8x1xf32, #tpu.memory_space<vmem>>, vector<8x1xf32>
    tpu.vector_store %arg10[%c0_22, %c0_23], %26 {strides = array<i32>} : memref<8x1xf32, #tpu.memory_space<vmem>>, vector<8x1xf32>,
    return
  }
  func.func @transform_0(%arg0: i32) -> (i32, i32) {
    %c0_i32 = arith.constant 0 : i32
    %c0_i32_0 = arith.constant 0 : i32
    return %arg0, %c0_i32 : i32, i32
  }
  func.func @transform_1(%arg0: i32) -> (i32, i32) {
    %c0_i32 = arith.constant 0 : i32
    %c0_i32_0 = arith.constant 0 : i32
    return %arg0, %c0_i32 : i32, i32
  }
  func.func @transform_2(%arg0: i32) -> (i32, i32) {
    %c0_i32 = arith.constant 0 : i32
    %c0_i32_0 = arith.constant 0 : i32
    %c0_i32_1 = arith.constant 0 : i32
    return %c0_i32, %c0_i32_0 : i32, i32
  }
  func.func @transform_3(%arg0: i32) -> (i32, i32) {
    %c0_i32 = arith.constant 0 : i32
    %c0_i32_0 = arith.constant 0 : i32
    %c0_i32_1 = arith.constant 0 : i32
    return %c0_i32, %c0_i32_0 : i32, i32
  }
  func.func @transform_4(%arg0: i32) -> (i32, i32) {
    %c0_i32 = arith.constant 0 : i32
    %c0_i32_0 = arith.constant 0 : i32
    %c0_i32_1 = arith.constant 0 : i32
    return %c0_i32, %c0_i32_0 : i32, i32
  }
  func.func @transform_5(%arg0: i32) -> (i32, i32) {
    %c0_i32 = arith.constant 0 : i32
    %c0_i32_0 = arith.constant 0 : i32
    %c0_i32_1 = arith.constant 0 : i32
    return %c0_i32, %c0_i32_0 : i32, i32
  }
  func.func @transform_6(%arg0: i32) -> (i32, i32) {
    %c0_i32 = arith.constant 0 : i32
    %c0_i32_0 = arith.constant 0 : i32
    %c0_i32_1 = arith.constant 0 : i32
    return %c0_i32, %c0_i32_0 : i32, i32
  }
  func.func @transform_7(%arg0: i32) -> (i32, i32) {
    %c0_i32 = arith.constant 0 : i32
    %c0_i32_0 = arith.constant 0 : i32
    %c0_i32_1 = arith.constant 0 : i32
    return %c0_i32, %c0_i32_0 : i32, i32
  }
  func.func @transform_8(%arg0: i32) -> (i32, i32) {
    %c0_i32 = arith.constant 0 : i32
    %c0_i32_0 = arith.constant 0 : i32
    %c0_i32_1 = arith.constant 0 : i32
    return %c0_i32, %c0_i32_0 : i32, i32
  }
  func.func @transform_9(%arg0: i32) -> (i32, i32) {
    %c0_i32 = arith.constant 0 : i32
    %c0_i32_0 = arith.constant 0 : i32
    return %arg0, %c0_i32 : i32, i32
  }
}

</mosaic_0001>

<llo_original>
// kernel: tpu_custom_call.1
$region0: #{tpu_custom_call.1}
  #allocation0 [shape = 'u32[]', space=smem, size = 0x4, offset = 0x4, fixed_abs, tag = 'smem constant byte address 0x4 - core index']
  #allocation1 [shape = 'u32[144,128]{1,0:T(1,128)}', space=vmem, size = 0x12000, scoped, tag = 'internal scratch']
  #allocation2 [shape = 'f32[1,1]{1,0:T(1,128)S(1)}', space=vmem, size = 0x200, scoped, tag = 'scoped memory for tpu_custom_call.1']
  %s0 = inlined_call_operand.hbm [shape: f32[8,12], index: 0, kind: input, shape index: {}]
  %s1 = inlined_call_operand.vmem [shape: f32[8,4], index: 1, kind: input, shape index: {}]
  %s2 = inlined_call_operand.hbm [shape: f32[12,32], index: 2, kind: input, shape index: {}]
  %s3 = inlined_call_operand.hbm [shape: f32[4,32], index: 3, kind: input, shape index: {}]
  %s4 = inlined_call_operand.vmem [shape: f32[1,32], index: 4, kind: input, shape index: {}]
  %s5 = inlined_call_operand.vmem [shape: f32[32,32], index: 5, kind: input, shape index: {}]
  %s6 = inlined_call_operand.vmem [shape: f32[1,32], index: 6, kind: input, shape index: {}]
  %s7 = inlined_call_operand.vmem [shape: f32[1,32], index: 7, kind: input, shape index: {}]
  %s8 = inlined_call_operand.<no memory space> [shape: f32[1,1], index: 8, kind: input, shape index: {}]
  %s9 = inlined_call_operand.vmem [shape: f32[8,1], index: 9, kind: output, shape index: {}]
  %s10 = sld [smem:[#allocation0]]
  $region58: #{tpu_custom_call.1} parent=0
    _
  %s12 = ssub.s32 1, %s10
  %s13 = scalar_select 0, %s12, %s10
  %v14 = vstv %s8
  %15 = vst [vmem:[#allocation2] sm:$0x1] %v14
  $region1: #{tpu_custom_call.1} parent=0
    #allocation3 [shape = 'u8[4096]{0}', space=vmem, size = 0x1000, scoped, tag = 'input window, operand 0, single buffered']
    #allocation4 [shape = 's32[1]{0}', space=sflag, size = 0x4, scoped, tag = 'scoped memory for tpu_custom_call.1']
    #allocation5 [shape = 'u8[8192]{0}', space=vmem, size = 0x2000, scoped, tag = 'input window, operand 2, single buffered']
    #allocation6 [shape = 's32[1]{0}', space=sflag, size = 0x4, scoped, tag = 'scoped memory for tpu_custom_call.1']
    #allocation7 [shape = 'u8[2048]{0}', space=vmem, size = 0x800, scoped, tag = 'input window, operand 3, single buffered']
    %16 = vsyncpa [#allocation4], 0
    %17 = vsyncpa [#allocation6], 0
    // Predicated region
    $region2: #{tpu_custom_call.1} parent=1 // pred_check
      _
    $region3: #{tpu_custom_call.1} parent=1 // pred_check_branch
      %19 = sbr.rel (0) target = $region5
    $region4: #{tpu_custom_call.1} parent=1 // pred_region
      %s21 = ssub.s32 128, 128
      %22 = vsyncadd [#allocation4], %s21
      %s24 = sshll.u32 [#allocation3], 4
      %s25 = int_to_ptr.vmem [resolvable:$true] %s24
      %27 = dma.hbm_to_vmem [thread:$0]  %s0, 128, %s25, [#allocation4]
    $region5: #{tpu_custom_call.1} parent=1 // pred_fallthru
      _
    // Predicated region
    $region6: #{tpu_custom_call.1} parent=1 // pred_check
      _
    $region7: #{tpu_custom_call.1} parent=1 // pred_check_branch
      %29 = sbr.rel (0) target = $region9
    $region8: #{tpu_custom_call.1} parent=1 // pred_region
      _
    $region9: #{tpu_custom_call.1} parent=1 // pred_fallthru
      _
    // Predicated region
    $region10: #{tpu_custom_call.1} parent=1 // pred_check
      _
    $region11: #{tpu_custom_call.1} parent=1 // pred_check_branch
      %31 = sbr.rel (0) target = $region13
    $region12: #{tpu_custom_call.1} parent=1 // pred_region
      %s33 = ssub.s32 256, 256
      %34 = vsyncadd [#allocation6], %s33
      %s35 = sshll.u32 [#allocation5], 4
      %s36 = int_to_ptr.vmem [resolvable:$true] %s35
      %41 = dma.hbm_to_vmem [thread:$0]  %s2, 256, %s36, [#allocation6], 128, 128, 8
    $region13: #{tpu_custom_call.1} parent=1 // pred_fallthru
      _
    // Predicated region
    $region14: #{tpu_custom_call.1} parent=1 // pred_check
      _
    $region15: #{tpu_custom_call.1} parent=1 // pred_check_branch
      %43 = sbr.rel (0) target = $region17
    $region16: #{tpu_custom_call.1} parent=1 // pred_region
      %s45 = ssub.s32 64, 64
      %46 = vsyncadd [#allocation6], %s45
      %s48 = sshll.u32 [#allocation7], 4
      %s49 = int_to_ptr.vmem [resolvable:$true] %s48
      %51 = dma.hbm_to_vmem [thread:$0]  %s3, 64, %s49, [#allocation6]
    $region17: #{tpu_custom_call.1} parent=1 // pred_fallthru
      _
    // Predicated region
    $region18: #{tpu_custom_call.1} parent=1 // pred_check
      _
    $region19: #{tpu_custom_call.1} parent=1 // pred_check_branch
      %53 = sbr.rel (0) target = $region21
    $region20: #{tpu_custom_call.1} parent=1 // pred_region
      _
    $region21: #{tpu_custom_call.1} parent=1 // pred_fallthru
      _
    // Predicated region
    $region22: #{tpu_custom_call.1} parent=1 // pred_check
      _
    $region23: #{tpu_custom_call.1} parent=1 // pred_check_branch
      %55 = sbr.rel (0) target = $region25
    $region24: #{tpu_custom_call.1} parent=1 // pred_region
      _
    $region25: #{tpu_custom_call.1} parent=1 // pred_fallthru
      _
    // Predicated region
    $region26: #{tpu_custom_call.1} parent=1 // pred_check
      _
    $region27: #{tpu_custom_call.1} parent=1 // pred_check_branch
      %57 = sbr.rel (0) target = $region29
    $region28: #{tpu_custom_call.1} parent=1 // pred_region
      _
    $region29: #{tpu_custom_call.1} parent=1 // pred_fallthru
      _
    // Predicated region
    $region30: #{tpu_custom_call.1} parent=1 // pred_check
      _
    $region31: #{tpu_custom_call.1} parent=1 // pred_check_branch
      %59 = sbr.rel (0) target = $region33
    $region32: #{tpu_custom_call.1} parent=1 // pred_region
      _
    $region33: #{tpu_custom_call.1} parent=1 // pred_fallthru
      _
    // Predicated region
    $region34: #{tpu_custom_call.1} parent=1 // pred_check
      _
    $region35: #{tpu_custom_call.1} parent=1 // pred_check_branch
      %61 = sbr.rel (0) target = $region37
    $region36: #{tpu_custom_call.1} parent=1 // pred_region
      _
    $region37: #{tpu_custom_call.1} parent=1 // pred_fallthru
      _
    // Predicated region
    $region38: #{tpu_custom_call.1} parent=1 // pred_check
      _
    $region39: #{tpu_custom_call.1} parent=1 // pred_check_branch
      %63 = sbr.rel (0) target = $region41
    $region40: #{tpu_custom_call.1} parent=1 // pred_region
      %64 = dma.done [#allocation4], 128
    $region41: #{tpu_custom_call.1} parent=1 // pred_fallthru
      _
    // Predicated region
    $region42: #{tpu_custom_call.1} parent=1 // pred_check
      _
    $region43: #{tpu_custom_call.1} parent=1 // pred_check_branch
      %66 = sbr.rel (0) target = $region45
    $region44: #{tpu_custom_call.1} parent=1 // pred_region
      %67 = dma.done [#allocation6], 256
    $region45: #{tpu_custom_call.1} parent=1 // pred_fallthru
      _
    // Predicated region
    $region46: #{tpu_custom_call.1} parent=1 // pred_check
      _
    $region47: #{tpu_custom_call.1} parent=1 // pred_check_branch
      %69 = sbr.rel (0) target = $region49
    $region48: #{tpu_custom_call.1} parent=1 // pred_region
      %70 = dma.done [#allocation6], 64
    $region49: #{tpu_custom_call.1} parent=1 // pred_fallthru
      _
    %v71 = vld [vmem:[#allocation3] sm:$0xff]
    %v72 = vld [vmem:[%s1] sm:$0xff]
    %v73 = vld [vmem:[#allocation5] sm:$0xff]
    %v74 = vld [vmem:[#allocation5 + $0x8] sm:$0xf]
    %v75 = vld [vmem:[#allocation7] sm:$0xf]
    %vm76 = vcmask 31744
    %v78 = vsel %vm76, %v72, 0
    %vm80 = vcmask 1043456
    %v82 = vsel %vm80, %v75, 0
    %84 = vmatprep.subr.mxu0 0.0
    %85 = vmatpush1.msra.mxu0 %v82
    %86 = vmatprep.subr.mxu0 0.0
    %87 = vmatpush1.msra.mxu0 0.0
    %88 = vmatprep.subr.mxu0 0.0
    %89 = vmatpush1.msra.mxu0 0.0
    %90 = vmatprep.subr.mxu0 0.0
    %91 = vmatpush1.msra.mxu0 0.0
    %92 = vmatprep.subr.mxu0 0.0
    %93 = vmatpush1.msra.mxu0 0.0
    %94 = vmatprep.subr.mxu0 0.0
    %95 = vmatpush1.msra.mxu0 0.0
    %96 = vmatprep.subr.mxu0 0.0
    %97 = vmatpush1.msra.mxu0 0.0
    %98 = vmatprep.subr.mxu0 0.0
    %99 = vmatpush1.msra.mxu0 0.0
    %100 = vmatprep.subr.mxu0 0.0
    %101 = vmatpush1.msra.mxu0 0.0
    %102 = vmatprep.subr.mxu0 0.0
    %103 = vmatpush1.msra.mxu0 0.0
    %104 = vmatprep.subr.mxu0 0.0
    %105 = vmatpush1.msra.mxu0 0.0
    %106 = vmatprep.subr.mxu0 0.0
    %107 = vmatpush1.msra.mxu0 0.0
    %108 = vmatprep.subr.mxu0 0.0
    %109 = vmatpush1.msra.mxu0 0.0
    %110 = vmatprep.subr.mxu0 0.0
    %111 = vmatpush1.msra.mxu0 0.0
    %112 = vmatprep.subr.mxu0 0.0
    %113 = vmatpush1.msra.mxu0 0.0
    %114 = vmatprep.subr.mxu0 0.0
    %115 = vmatpush1.msra.mxu0 0.0
    %116 = vmatprep.subr.mxu0 0.0
    %117 = vmatpush1.msra.mxu0 0.0
    %118 = vmatprep.subr.mxu0 0.0
    %119 = vmatpush1.msra.mxu0 0.0
    %120 = vmatprep.subr.mxu0 0.0
    %121 = vmatpush1.msra.mxu0 0.0
    %122 = vmatprep.subr.mxu0 0.0
    %123 = vmatpush1.msra.mxu0 0.0
    %124 = vmatprep.subr.mxu0 0.0
    %125 = vmatpush1.msra.mxu0 0.0
    %126 = vmatprep.subr.mxu0 0.0
    %127 = vmatpush1.msra.mxu0 0.0
    %128 = vmatprep.subr.mxu0 0.0
    %129 = vmatpush1.msra.mxu0 0.0
    %130 = vmatprep.subr.mxu0 0.0
    %131 = vmatpush1.msra.mxu0 0.0
    %132 = vmatprep.subr.mxu0 0.0
    %133 = vmatpush1.msra.mxu0 0.0
    %134 = vmatprep.subr.mxu0 0.0
    %135 = vmatpush1.msra.mxu0 0.0
    %136 = vmatprep.subr.mxu0 0.0
    %137 = vmatpush1.msra.mxu0 0.0
    %138 = vmatprep.subr.mxu0 0.0
    %139 = vmatpush1.msra.mxu0 0.0
    %140 = vmatprep.subr.mxu0 0.0
    %141 = vmatpush1.msra.mxu0 0.0
    %142 = vmatprep.subr.mxu0 0.0
    %143 = vmatpush1.msra.mxu0 0.0
    %144 = vmatprep.subr.mxu0 0.0
    %145 = vmatpush1.msra.mxu0 0.0
    %146 = vmatprep.subr.mxu0 0.0
    %147 = vmatpush1.msra.mxu0 0.0
    %148 = vmatprep.mubr.f32.mxu0 0.0
    %149 = vmatmul.mubr.f32.gmra.mrb[0].mxu0 %v78
    %v150 = vpop.f32.mrb[0].mxu0
    %v151 = vadd.f32 0.0, %v150
    %v152 = vpop.f32.mrb[0].mxu0
    %153 = vdwg.mxu0
    %vm154 = vcmask 97280
    %v156 = vsel %vm154, %v71, 0
    %v159 = vsel %vm80, %v74, 0
    %161 = vmatprep.subr.mxu0 0.0
    %162 = vmatpush1.msra.mxu0 %v73
    %163 = vmatprep.subr.mxu0 0.0
    %164 = vmatpush1.msra.mxu0 %v159
    %165 = vmatprep.subr.mxu0 0.0
    %166 = vmatpush1.msra.mxu0 0.0
    %167 = vmatprep.subr.mxu0 0.0
    %168 = vmatpush1.msra.mxu0 0.0
    %169 = vmatprep.subr.mxu0 0.0
    %170 = vmatpush1.msra.mxu0 0.0
    %171 = vmatprep.subr.mxu0 0.0
    %172 = vmatpush1.msra.mxu0 0.0
    %173 = vmatprep.subr.mxu0 0.0
    %174 = vmatpush1.msra.mxu0 0.0
    %175 = vmatprep.subr.mxu0 0.0
    %176 = vmatpush1.msra.mxu0 0.0
    %177 = vmatprep.subr.mxu0 0.0
    %178 = vmatpush1.msra.mxu0 0.0
    %179 = vmatprep.subr.mxu0 0.0
    %180 = vmatpush1.msra.mxu0 0.0
    %181 = vmatprep.subr.mxu0 0.0
    %182 = vmatpush1.msra.mxu0 0.0
    %183 = vmatprep.subr.mxu0 0.0
    %184 = vmatpush1.msra.mxu0 0.0
    %185 = vmatprep.subr.mxu0 0.0
    %186 = vmatpush1.msra.mxu0 0.0
    %187 = vmatprep.subr.mxu0 0.0
    %188 = vmatpush1.msra.mxu0 0.0
    %189 = vmatprep.subr.mxu0 0.0
    %190 = vmatpush1.msra.mxu0 0.0
    %191 = vmatprep.subr.mxu0 0.0
    %192 = vmatpush1.msra.mxu0 0.0
    %193 = vmatprep.subr.mxu0 0.0
    %194 = vmatpush1.msra.mxu0 0.0
    %195 = vmatprep.subr.mxu0 0.0
    %196 = vmatpush1.msra.mxu0 0.0
    %197 = vmatprep.subr.mxu0 0.0
    %198 = vmatpush1.msra.mxu0 0.0
    %199 = vmatprep.subr.mxu0 0.0
    %200 = vmatpush1.msra.mxu0 0.0
    %201 = vmatprep.subr.mxu0 0.0
    %202 = vmatpush1.msra.mxu0 0.0
    %203 = vmatprep.subr.mxu0 0.0
    %204 = vmatpush1.msra.mxu0 0.0
    %205 = vmatprep.subr.mxu0 0.0
    %206 = vmatpush1.msra.mxu0 0.0
    %207 = vmatprep.subr.mxu0 0.0
    %208 = vmatpush1.msra.mxu0 0.0
    %209 = vmatprep.subr.mxu0 0.0
    %210 = vmatpush1.msra.mxu0 0.0
    %211 = vmatprep.subr.mxu0 0.0
    %212 = vmatpush1.msra.mxu0 0.0
    %213 = vmatprep.subr.mxu0 0.0
    %214 = vmatpush1.msra.mxu0 0.0
    %215 = vmatprep.subr.mxu0 0.0
    %216 = vmatpush1.msra.mxu0 0.0
    %217 = vmatprep.subr.mxu0 0.0
    %218 = vmatpush1.msra.mxu0 0.0
    %219 = vmatprep.subr.mxu0 0.0
    %220 = vmatpush1.msra.mxu0 0.0
    %221 = vmatprep.subr.mxu0 0.0
    %222 = vmatpush1.msra.mxu0 0.0
    %223 = vmatprep.subr.mxu0 0.0
    %224 = vmatpush1.msra.mxu0 0.0
    %225 = vmatprep.mubr.f32.mxu0 0.0
    %226 = vmatmul.mubr.f32.gmra.mrb[0].mxu0 %v156
    %v227 = vpop.f32.mrb[0].mxu0
    %v228 = vadd.f32 %v151, %v227
    %v229 = vpop.f32.mrb[0].mxu0
    %230 = vdwg.mxu0
    %v231 = vld [vmem:[%s4] sm:$0x1]
    %v233 = vlaneseq
    %v234 = vshrl.u32 %v233, 7
    %v235 = vsub.s32 0, %v234
    %v236 = vrot.slane %v231, %v235
    %v238 = vadd.f32 %v228, %v236
    %v239 = vmax.f32 %v238, 0.0
    %v240 = vld [vmem:[%s5] sm:$0xff]
    %v241 = vld [vmem:[%s5 + $0x8] sm:$0xff]
    %v242 = vld [vmem:[%s5 + $0x10] sm:$0xff]
    %v243 = vld [vmem:[%s5 + $0x18] sm:$0xff]
    %v244 = vld [vmem:[%s6] sm:$0x1]
    %v246 = vlaneseq
    %v247 = vshrl.u32 %v246, 7
    %v248 = vsub.s32 0, %v247
    %v249 = vrot.slane %v244, %v248
    %vm251 = vcmask 261120
    %v253 = vsel %vm251, %v239, 0
    %255 = vmatprep.subr.mxu0 0.0
    %256 = vmatpush1.msra.mxu0 %v240
    %257 = vmatprep.subr.mxu0 0.0
    %258 = vmatpush1.msra.mxu0 %v241
    %259 = vmatprep.subr.mxu0 0.0
    %260 = vmatpush1.msra.mxu0 %v242
    %261 = vmatprep.subr.mxu0 0.0
    %262 = vmatpush1.msra.mxu0 %v243
    %263 = vmatprep.subr.mxu0 0.0
    %264 = vmatpush1.msra.mxu0 0.0
    %265 = vmatprep.subr.mxu0 0.0
    %266 = vmatpush1.msra.mxu0 0.0
    %267 = vmatprep.subr.mxu0 0.0
    %268 = vmatpush1.msra.mxu0 0.0
    %269 = vmatprep.subr.mxu0 0.0
    %270 = vmatpush1.msra.mxu0 0.0
    %271 = vmatprep.subr.mxu0 0.0
    %272 = vmatpush1.msra.mxu0 0.0
    %273 = vmatprep.subr.mxu0 0.0
    %274 = vmatpush1.msra.mxu0 0.0
    %275 = vmatprep.subr.mxu0 0.0
    %276 = vmatpush1.msra.mxu0 0.0
    %277 = vmatprep.subr.mxu0 0.0
    %278 = vmatpush1.msra.mxu0 0.0
    %279 = vmatprep.subr.mxu0 0.0
    %280 = vmatpush1.msra.mxu0 0.0
    %281 = vmatprep.subr.mxu0 0.0
    %282 = vmatpush1.msra.mxu0 0.0
    %283 = vmatprep.subr.mxu0 0.0
    %284 = vmatpush1.msra.mxu0 0.0
    %285 = vmatprep.subr.mxu0 0.0
    %286 = vmatpush1.msra.mxu0 0.0
    %287 = vmatprep.subr.mxu0 0.0
    %288 = vmatpush1.msra.mxu0 0.0
    %289 = vmatprep.subr.mxu0 0.0
    %290 = vmatpush1.msra.mxu0 0.0
    %291 = vmatprep.subr.mxu0 0.0
    %292 = vmatpush1.msra.mxu0 0.0
    %293 = vmatprep.subr.mxu0 0.0
    %294 = vmatpush1.msra.mxu0 0.0
    %295 = vmatprep.subr.mxu0 0.0
    %296 = vmatpush1.msra.mxu0 0.0
    %297 = vmatprep.subr.mxu0 0.0
    %298 = vmatpush1.msra.mxu0 0.0
    %299 = vmatprep.subr.mxu0 0.0
    %300 = vmatpush1.msra.mxu0 0.0
    %301 = vmatprep.subr.mxu0 0.0
    %302 = vmatpush1.msra.mxu0 0.0
    %303 = vmatprep.subr.mxu0 0.0
    %304 = vmatpush1.msra.mxu0 0.0
    %305 = vmatprep.subr.mxu0 0.0
    %306 = vmatpush1.msra.mxu0 0.0
    %307 = vmatprep.subr.mxu0 0.0
    %308 = vmatpush1.msra.mxu0 0.0
    %309 = vmatprep.subr.mxu0 0.0
    %310 = vmatpush1.msra.mxu0 0.0
    %311 = vmatprep.subr.mxu0 0.0
    %312 = vmatpush1.msra.mxu0 0.0
    %313 = vmatprep.subr.mxu0 0.0
    %314 = vmatpush1.msra.mxu0 0.0
    %315 = vmatprep.subr.mxu0 0.0
    %316 = vmatpush1.msra.mxu0 0.0
    %317 = vmatprep.subr.mxu0 0.0
    %318 = vmatpush1.msra.mxu0 0.0
    %319 = vmatprep.mubr.f32.mxu0 0.0
    %320 = vmatmul.mubr.f32.gmra.mrb[0].mxu0 %v253
    %v321 = vpop.f32.mrb[0].mxu0
    %v322 = vadd.f32 %v249, %v321
    %v323 = vpop.f32.mrb[0].mxu0
    %324 = vdwg.mxu0
    %v325 = vmax.f32 %v322, 0.0
    %v326 = vld [vmem:[%s7] sm:$0x1]
    %v328 = vlaneseq
    %v329 = vshrl.u32 %v328, 7
    %v330 = vsub.s32 0, %v329
    %v331 = vrot.slane %v326, %v330
    %v333 = vmul.f32 %v325, %v331
    %v334 = vsel %vm251, %v333, 0.0
    %335 = vadd.xlane.f32.xlu0 %v334
    %v336 = vpop.xlane.xlu0 %335
    %v337 = vld [vmem:[#allocation2] sm:$0x1]
    %v339 = vlaneseq
    %v340 = vshrl.u32 %v339, 7
    %v341 = vsub.s32 0, %v340
    %v342 = vrot.slane %v337, %v341
    %v344 = vadd.f32 %v336, %v342
    %vm345 = vcmask 7168
    %346 = vst.msk [vmem:[%s9] sm:$0xff] %vm345, %v344
    // Predicated region
    $region50: #{tpu_custom_call.1} parent=1 // pred_check
      _
    $region51: #{tpu_custom_call.1} parent=1 // pred_check_branch
      %348 = sbr.rel (0) target = $region53
    $region52: #{tpu_custom_call.1} parent=1 // pred_region
      _
    $region53: #{tpu_custom_call.1} parent=1 // pred_fallthru
      _
    // Predicated region
    $region54: #{tpu_custom_call.1} parent=1 // pred_check
      _
    $region55: #{tpu_custom_call.1} parent=1 // pred_check_branch
      %350 = sbr.rel (0) target = $region57
    $region56: #{tpu_custom_call.1} parent=1 // pred_region
      _
    $region57: #{tpu_custom_call.1} parent=1 // pred_fallthru
      _
    %351 = vsyncpa [#allocation4], 1
    %352 = vsyncpa [#allocation6], 1

</llo_original>
